<compile_context>
chip_gen: v7x
topology: tpu7x:2x2x1
jax: 0.10.0
libtpu: 0.0.40
codegen_flags: <defaults>
</compile_context>

<pallas_src>
import functools
import numpy as np
import jax
import jax.numpy as jnp
from jax.experimental import pallas as pl
from jax.experimental.pallas import tpu as pltpu


def _round_up(v, m):
    return ((v + m - 1) // m) * m


# ----------------------------------------------------------------------------
# Filter design: numpy re-implementation of scipy.signal.firwin (Kaiser window)
# ----------------------------------------------------------------------------
def _kaiser_atten(numtaps, width):
    return 2.285 * (numtaps - 1) * np.pi * width + 7.95


def _kaiser_beta(a):
    if a > 50:
        return 0.1102 * (a - 8.7)
    if a > 21:
        return 0.5842 * (a - 21) ** 0.4 + 0.07886 * (a - 21)
    return 0.0


def design_lowpass_filter(numtaps, cutoff, width, fs, radial=False):
    if numtaps == 1:
        return None
    assert numtaps > 1
    if radial:
        # TODO(synk): radial jinc filter needs scipy.special.j1; not implemented here.
        raise NotImplementedError("radial filter not supported in this script")
    beta = _kaiser_beta(_kaiser_atten(numtaps, width / (fs / 2.0)))
    win = np.kaiser(numtaps, beta)
    m = np.arange(numtaps) - (numtaps - 1) / 2.0
    h = np.sinc(2.0 * cutoff / fs * m) * win
    h = h / np.sum(h)                     # pass_zero normalization (DC gain = 1)
    return h.astype(np.float32)


# ----------------------------------------------------------------------------
# 1-D upfirdn (zero-insert upsample -> pad/crop -> FIR -> stride) as a matrix.
# Matches torch upfirdn2d ref (conv2d with flipped filter == np.convolve).
# ----------------------------------------------------------------------------
def _upfirdn1d_matrix(length, f, up, down, pad0, pad1):
    f = np.asarray(f, dtype=np.float64)
    cols = []
    for i in range(length):
        v = np.zeros(length, np.float64)
        v[i] = 1.0
        x = np.zeros(length * up, np.float64)
        x[::up] = v
        x = np.concatenate([np.zeros(max(pad0, 0)), x, np.zeros(max(pad1, 0))])
        x = x[max(-pad0, 0): x.shape[0] - max(-pad1, 0)]
        y = np.convolve(x, f, mode="valid")
        cols.append(y[::down])
    return np.stack(cols, axis=1).astype(np.float32)     # (L_out, length)


# ----------------------------------------------------------------------------
# Pallas kernel: bias + up-FIR + lrelu/gain/clamp + down-FIR, all as lane-dense
# 2-D MXU matmuls on a (S, P*S) plane-batched slab.
# ----------------------------------------------------------------------------
def _filtered_lrelu_kernel(x_ref, b_ref, ah_ref, awt_ref, bh_ref, bwt_ref,
                           o_ref, *, gain, slope, clamp):
    # x block: (S, P*S), columns grouped per plane; bias block: (1, P*S).
    x = x_ref[...].astype(jnp.float32) + b_ref[...]
    xb = x.astype(jnp.bfloat16)
    # Upsample stage (zero-insert + pad + separable FIR), as two MXU matmuls.
    y = jnp.dot(ah_ref[...], xb,
                preferred_element_type=jnp.float32)            # (Mh_p, P*S)
    y = jnp.dot(y.astype(jnp.bfloat16), awt_ref[...],
                preferred_element_type=jnp.float32)            # (Mh_p, P*Mw_p)
    # Leaky-ReLU * gain: one select + one multiply, f32 on the accumulator.
    y = y * jnp.where(y >= 0.0, jnp.float32(gain), jnp.float32(slope * gain))
    if clamp is not None and clamp >= 0.0:
        y = jnp.clip(y, -jnp.float32(clamp), jnp.float32(clamp))
    # Downsample stage (separable FIR + stride), as two MXU matmuls.
    z = jnp.dot(bh_ref[...], y.astype(jnp.bfloat16),
                preferred_element_type=jnp.float32)            # (T, P*Mw_p)
    z = jnp.dot(z.astype(jnp.bfloat16), bwt_ref[...],
                preferred_element_type=jnp.float32)            # (T, P*T_p)
    o_ref[...] = z.astype(o_ref.dtype)                         # lane-dense store


# ----------------------------------------------------------------------------
# Layer
# ----------------------------------------------------------------------------
class FilteringActLayer:
    def __init__(self, out_channels, in_size, out_size, in_sampling_rate,
                 out_sampling_rate, in_cutoff, out_cutoff, in_half_width,
                 out_half_width, filter_size, use_radial_filter, conv_padding,
                 act_upsampling, *, key):
        self.out_channels = out_channels
        self.in_size = in_size
        self.out_size = out_size

        temp = max(in_sampling_rate, out_sampling_rate) * act_upsampling
        up_factor = int(np.rint(temp / in_sampling_rate))
        assert in_sampling_rate * up_factor == temp
        if up_factor > 1:
            self.up_factor, self.up_taps = up_factor, filter_size * up_factor
        else:
            self.up_factor, self.up_taps = 1, 1
        self.up_filter = design_lowpass_filter(
            self.up_taps, in_cutoff, in_half_width * 2, temp, radial=False)

        down_factor = int(np.rint(temp / out_sampling_rate))
        assert out_sampling_rate * down_factor == temp
        if down_factor > 1:
            self.down_factor, self.down_taps = down_factor, filter_size * down_factor
        else:
            self.down_factor, self.down_taps = 1, 1
        self.down_filter = design_lowpass_filter(
            self.down_taps, out_cutoff, out_half_width * 2, temp,
            radial=use_radial_filter)

        pad_total = (out_size - 1) * self.down_factor + 1
        pad_total = pad_total - (in_size + conv_padding) * self.up_factor
        pad_total = pad_total + self.up_taps + self.down_taps - 2
        pad_lo = (pad_total + self.up_factor) // 2
        pad_hi = pad_total - pad_lo
        self.padding = (int(pad_lo), int(pad_hi), int(pad_lo), int(pad_hi))

        # Parameter (nn.Parameter(zeros) in torch — use a deterministic
        # non-zero value so the bias path is actually exercised).
        self.bias = jax.random.normal(key, (out_channels,), jnp.float32) * 0.1

        # ---- Bake up/down upfirdn stages into per-axis operator matrices ----
        fu = self.up_filter if self.up_filter is not None else np.ones((1,), np.float32)
        fu = fu * float(self.up_factor)        # per-axis share of gain = up**2
        fd = self.down_filter if self.down_filter is not None else np.ones((1,), np.float32)
        px0, px1, py0, py1 = self.padding      # [x0, x1, y0, y1] convention
        A_h = _upfirdn1d_matrix(in_size, fu, self.up_factor, 1, py0, py1)
        A_w = _upfirdn1d_matrix(in_size, fu, self.up_factor, 1, px0, px1)
        B_h = _upfirdn1d_matrix(A_h.shape[0], fd, 1, self.down_factor, 0, 0)
        B_w = _upfirdn1d_matrix(A_w.shape[0], fd, 1, self.down_factor, 0, 0)
        assert B_h.shape[0] == out_size and B_w.shape[0] == out_size
        # unpadded f32 copies for the pure-JAX reference / numerics validation
        self._A_h_f32, self._A_w_f32 = A_h, A_w
        self._B_h_f32, self._B_w_f32 = B_h, B_w

        # ---- TPU-friendly packing ------------------------------------------
        S, T = in_size, out_size
        lane_q = int(np.gcd(S, 128))
        P = 128 // lane_q                 # planes per block: (P*S) % 128 == 0
        Mh, Mw = A_h.shape[0], A_w.shape[0]
        Mh_p = _round_up(Mh, 8)                        # sublane-aligned rows
        Mw_p = _round_up(Mw, max(8, 128 // P))         # P*Mw_p % 128 == 0
        T_p = _round_up(T, 128 // P)                   # P*T_p  % 128 == 0
        self.planes_per_block = P
        self.T_p = T_p
        # TODO(synk): for very large in_size, additionally tile along the row
        # (H) axis and re-derive P against the 64 MiB (v7x) VMEM budget.

        A_h_p = np.zeros((Mh_p, S), np.float32); A_h_p[:Mh] = A_h
        B_h_p = np.zeros((T, Mh_p), np.float32); B_h_p[:, :Mh] = B_h
        A_wT_p = np.zeros((S, Mw_p), np.float32); A_wT_p[:, :Mw] = A_w.T
        B_wT_p = np.zeros((Mw_p, T_p), np.float32); B_wT_p[:Mw, :T] = B_w.T
        # Block-diagonal W-axis operators: one plane per diagonal block, so the
        # W filter is a single 2-D matmul over the plane-batched lane axis.
        A_wT_bd = np.kron(np.eye(P, dtype=np.float32), A_wT_p)   # (P*S,   P*Mw_p)
        B_wT_bd = np.kron(np.eye(P, dtype=np.float32), B_wT_p)   # (P*Mw_p, P*T_p)

        op_dtype = jnp.bfloat16   # MXU operands; f32 accumulation in the kernel
        self.A_h_p = jnp.asarray(A_h_p, op_dtype)
        self.B_h_p = jnp.asarray(B_h_p, op_dtype)
        self.A_wT_bd = jnp.asarray(A_wT_bd, op_dtype)
        self.B_wT_bd = jnp.asarray(B_wT_bd, op_dtype)

    # Pure-JAX f32 reference (same baked operators) for numerics validation.
    def reference(self, x, gain, slope, clamp):
        A_h = jnp.asarray(self._A_h_f32); A_w = jnp.asarray(self._A_w_f32)
        B_h = jnp.asarray(self._B_h_f32); B_w = jnp.asarray(self._B_w_f32)
        xb = x.astype(jnp.float32) + self.bias.reshape(1, -1, 1, 1)
        y = jnp.einsum('ms,ncsw->ncmw', A_h, xb)
        y = jnp.einsum('ncmw,vw->ncmv', y, A_w)
        y = jnp.where(y >= 0, y, y * slope) * gain
        if clamp is not None and clamp >= 0:
            y = jnp.clip(y, -clamp, clamp)
        z = jnp.einsum('tm,ncmv->nctv', B_h, y)
        z = jnp.einsum('nctv,uv->nctu', z, B_w)
        return z.astype(x.dtype)

    def forward(self, x, gain, slope, clamp):
        # layout: NCHW
        N, C, H, W = x.shape
        assert C == self.out_channels and H == self.in_size and W == self.in_size
        S, T = self.in_size, self.out_size
        P, T_p = self.planes_per_block, self.T_p
        NC = N * C
        NC_pad = _round_up(NC, P)
        Lb = P * S

        # --- layout plumbing: NCHW -> (S, NC_pad*S) lane-major slab ----------
        x_flat = x.reshape(NC, S, S)
        if NC_pad != NC:
            x_flat = jnp.concatenate(
                [x_flat, jnp.zeros((NC_pad - NC, S, S), x.dtype)], axis=0)
        x_wide = x_flat.transpose(1, 0, 2).reshape(S, NC_pad * S)

        bias_plane = jnp.tile(self.bias, N)
        if NC_pad != NC:
            bias_plane = jnp.concatenate(
                [bias_plane, jnp.zeros((NC_pad - NC,), jnp.float32)])
        bias_row = jnp.repeat(bias_plane, S).reshape(1, NC_pad * S)

        Mh_p = self.A_h_p.shape[0]
        Mw_blk = self.A_wT_bd.shape[1]            # = P * Mw_p

        kernel = functools.partial(
            _filtered_lrelu_kernel,
            gain=float(gain), slope=float(slope),
            clamp=(None if clamp is None else float(clamp)))

        num_blocks = NC_pad // P
        # VMEM footprint per step here is well under the 32 MiB scoped default;
        # for large layers re-derive P / vmem_limit_bytes (v7x has 64 MiB total).
        out_wide = pl.pallas_call(
            kernel,
            out_shape=jax.ShapeDtypeStruct((T, NC_pad * T_p), x.dtype),
            grid=(num_blocks,),
            in_specs=[
                pl.BlockSpec((S, Lb), lambda i: (0, i)),            # x slab block
                pl.BlockSpec((1, Lb), lambda i: (0, i)),            # per-plane bias
                pl.BlockSpec((Mh_p, S), lambda i: (0, 0)),          # A_h (padded)
                pl.BlockSpec((Lb, Mw_blk), lambda i: (0, 0)),       # kron(I_P, A_w^T)
                pl.BlockSpec((T, Mh_p), lambda i: (0, 0)),          # B_h (padded)
                pl.BlockSpec((Mw_blk, P * T_p), lambda i: (0, 0)),  # kron(I_P, B_w^T)
            ],
            out_specs=pl.BlockSpec((T, P * T_p), lambda i: (0, i)),
            compiler_params=pltpu.CompilerParams(
                dimension_semantics=("parallel",)),
        )(x_wide, bias_row, self.A_h_p, self.A_wT_bd, self.B_h_p, self.B_wT_bd)

        # --- layout plumbing back: (T, NC_pad*T_p) -> NCHW --------------------
        out = out_wide.reshape(T, NC_pad, T_p)[:, :NC, :T]
        out = out.transpose(1, 0, 2).reshape(N, C, T, T)
        return out


if __name__ == "__main__":
    key = jax.random.PRNGKey(0)
    k_bias, k_x = jax.random.split(key)

    layer = FilteringActLayer(
        out_channels=4, in_size=16, out_size=16,
        in_sampling_rate=16, out_sampling_rate=16,
        in_cutoff=6.0, out_cutoff=6.0,
        in_half_width=2.0, out_half_width=2.0,
        filter_size=6, use_radial_filter=False,
        conv_padding=0, act_upsampling=2,
        key=k_bias)

    x = jax.random.normal(k_x, (2, 4, 16, 16), jnp.float32)
    gain, slope, clamp = float(np.sqrt(2.0)), 0.2, 256.0

    out = layer.forward(x, gain=gain, slope=slope, clamp=clamp)
    out = jax.block_until_ready(out)

    assert out.shape == (2, 4, 16, 16)
    assert out.dtype == x.dtype
    assert bool(jnp.all(jnp.isfinite(out)))

    # Validate Pallas path (incl. bf16 MXU operands) against the f32 reference.
    ref = jax.block_until_ready(layer.reference(x, gain, slope, clamp))
    err = float(jnp.max(jnp.abs(out.astype(jnp.float32) - ref.astype(jnp.float32))))
    tol = 5e-2 * max(1.0, float(jnp.max(jnp.abs(ref))))
    assert err <= tol, f"max abs err {err} > tol {tol}"

    print("KERNEL_OK")
</pallas_src>

<mosaic_0001>
module attributes {stable_mosaic.version = 11 : i64} {
  func.func @_filtered_lrelu_kernel(%arg0: i32, %arg1: memref<16x128xf32, #tpu.memory_space<vmem>>, %arg2: memref<1x128xf32, #tpu.memory_space<vmem>>, %arg3: memref<48x16xbf16, #tpu.memory_space<vmem>>, %arg4: memref<128x384xbf16, #tpu.memory_space<vmem>>, %arg5: memref<16x48xbf16, #tpu.memory_space<vmem>>, %arg6: memref<384x128xbf16, #tpu.memory_space<vmem>>, %arg7: memref<16x128xf32, #tpu.memory_space<vmem>>) attributes {dimension_semantics = [#tpu.dimension_semantics<parallel>], iteration_bounds = array<i64: 1>, scalar_prefetch = 0 : i64, scratch_operands = 0 : i64, tpu.core_type = #tpu.core_type<tc>, window_params = [{transform_indices = @transform_0, window_bounds = array<i64: 16, 128>}, {transform_indices = @transform_1, window_bounds = array<i64: 1, 128>}, {pipeline_mode = #tpu.pipeline_mode<synchronous>, transform_indices = @transform_2, window_bounds = array<i64: 48, 16>}, {pipeline_mode = #tpu.pipeline_mode<synchronous>, transform_indices = @transform_3, window_bounds = array<i64: 128, 384>}, {pipeline_mode = #tpu.pipeline_mode<synchronous>, transform_indices = @transform_4, window_bounds = array<i64: 16, 48>}, {pipeline_mode = #tpu.pipeline_mode<synchronous>, transform_indices = @transform_5, window_bounds = array<i64: 384, 128>}, {transform_indices = @transform_6, window_bounds = array<i64: 16, 128>}]} {
    %c0 = arith.constant 0 : index
    %c0_0 = arith.constant 0 : index
    %0 = vector.load %arg1[%c0, %c0_0] : memref<16x128xf32, #tpu.memory_space<vmem>>, vector<16x128xf32>
    %c0_1 = arith.constant 0 : index
    %c0_2 = arith.constant 0 : index
    %1 = vector.load %arg2[%c0_1, %c0_2] : memref<1x128xf32, #tpu.memory_space<vmem>>, vector<1x128xf32>
    %2 = vector.broadcast %1 : vector<1x128xf32> to vector<16x128xf32>
    %3 = arith.addf %0, %2 : vector<16x128xf32>
    %4 = arith.truncf %3 : vector<16x128xf32> to vector<16x128xbf16>
    %c0_3 = arith.constant 0 : index
    %c0_4 = arith.constant 0 : index
    %5 = vector.load %arg3[%c0_3, %c0_4] : memref<48x16xbf16, #tpu.memory_space<vmem>>, vector<48x16xbf16>
    %cst = arith.constant dense<0.000000e+00> : vector<48x128xf32>
    %6 = tpu.matmul %5, %4, %cst {dimension_numbers = #tpu.dot_dimension_numbers<[1], [0], [0], [1], [0, 0, 1, 1], [], []>} : vector<48x16xbf16>, vector<16x128xbf16>, vector<48x128xf32> -> vector<48x128xf32>
    %7 = arith.truncf %6 : vector<48x128xf32> to vector<48x128xbf16>
    %c0_5 = arith.constant 0 : index
    %c0_6 = arith.constant 0 : index
    %8 = vector.load %arg4[%c0_5, %c0_6] : memref<128x384xbf16, #tpu.memory_space<vmem>>, vector<128x384xbf16>
    %cst_7 = arith.constant dense<0.000000e+00> : vector<48x384xf32>
    %9 = tpu.matmul %7, %8, %cst_7 {dimension_numbers = #tpu.dot_dimension_numbers<[1], [0], [0], [1], [0, 0, 1, 1], [], []>} : vector<48x128xbf16>, vector<128x384xbf16>, vector<48x384xf32> -> vector<48x384xf32>
    %cst_8 = arith.constant 0.000000e+00 : f32
    %10 = vector.broadcast %cst_8 : f32 to vector<48x384xf32>
    %11 = arith.cmpf oge, %9, %10 : vector<48x384xf32>
    %cst_9 = arith.constant 1.41421354 : f32
    %cst_10 = arith.constant 0.282842726 : f32
    %12 = vector.broadcast %cst_9 : f32 to vector<48x384xf32>
    %13 = vector.broadcast %cst_10 : f32 to vector<48x384xf32>
    %14 = arith.select %11, %12, %13 : vector<48x384xi1>, vector<48x384xf32>
    %15 = arith.mulf %9, %14 : vector<48x384xf32>
    %cst_11 = arith.constant 0.000000e+00 : f32
    %cst_12 = arith.constant 2.560000e+02 : f32
    %16 = arith.subf %cst_11, %cst_12 : f32
    %cst_13 = arith.constant 2.560000e+02 : f32
    %17 = vector.broadcast %16 : f32 to vector<48x384xf32>
    %18 = arith.maximumf %17, %15 : vector<48x384xf32>
    %19 = vector.broadcast %cst_13 : f32 to vector<48x384xf32>
    %20 = arith.minimumf %19, %18 : vector<48x384xf32>
    %c0_14 = arith.constant 0 : index
    %c0_15 = arith.constant 0 : index
    %21 = vector.load %arg5[%c0_14, %c0_15] : memref<16x48xbf16, #tpu.memory_space<vmem>>, vector<16x48xbf16>
    %22 = arith.truncf %20 : vector<48x384xf32> to vector<48x384xbf16>
    %cst_16 = arith.constant dense<0.000000e+00> : vector<16x384xf32>
    %23 = tpu.matmul %21, %22, %cst_16 {dimension_numbers = #tpu.dot_dimension_numbers<[1], [0], [0], [1], [0, 0, 1, 1], [], []>} : vector<16x48xbf16>, vector<48x384xbf16>, vector<16x384xf32> -> vector<16x384xf32>
    %24 = arith.truncf %23 : vector<16x384xf32> to vector<16x384xbf16>
    %c0_17 = arith.constant 0 : index
    %c0_18 = arith.constant 0 : index
    %25 = vector.load %arg6[%c0_17, %c0_18] : memref<384x128xbf16, #tpu.memory_space<vmem>>, vector<384x128xbf16>
    %cst_19 = arith.constant dense<0.000000e+00> : vector<16x128xf32>
    %26 = tpu.matmul %24, %25, %cst_19 {dimension_numbers = #tpu.dot_dimension_numbers<[1], [0], [0], [1], [0, 0, 1, 1], [], []>} : vector<16x384xbf16>, vector<384x128xbf16>, vector<16x128xf32> -> vector<16x128xf32>
    %c0_20 = arith.constant 0 : index
    %c0_21 = arith.constant 0 : index
    %27 = vector.load %arg7[%c0_20, %c0_21] : memref<16x128xf32, #tpu.memory_space<vmem>>, vector<16x128xf32>
    tpu.vector_store %arg7[%c0_20, %c0_21], %26 {strides = array<i32>} : memref<16x128xf32, #tpu.memory_space<vmem>>, vector<16x128xf32>,
    return
  }
  func.func @transform_0(%arg0: i32) -> (i32, i32) {
    %c0_i32 = arith.constant 0 : i32
    %c0_i32_0 = arith.constant 0 : i32
    return %c0_i32, %arg0 : i32, i32
  }
  func.func @transform_1(%arg0: i32) -> (i32, i32) {
    %c0_i32 = arith.constant 0 : i32
    %c0_i32_0 = arith.constant 0 : i32
    return %c0_i32, %arg0 : i32, i32
  }
  func.func @transform_2(%arg0: i32) -> (i32, i32) {
    %c0_i32 = arith.constant 0 : i32
    %c0_i32_0 = arith.constant 0 : i32
    %c0_i32_1 = arith.constant 0 : i32
    return %c0_i32, %c0_i32_0 : i32, i32
  }
  func.func @transform_3(%arg0: i32) -> (i32, i32) {
    %c0_i32 = arith.constant 0 : i32
    %c0_i32_0 = arith.constant 0 : i32
    %c0_i32_1 = arith.constant 0 : i32
    return %c0_i32, %c0_i32_0 : i32, i32
  }
  func.func @transform_4(%arg0: i32) -> (i32, i32) {
    %c0_i32 = arith.constant 0 : i32
    %c0_i32_0 = arith.constant 0 : i32
    %c0_i32_1 = arith.constant 0 : i32
    return %c0_i32, %c0_i32_0 : i32, i32
  }
  func.func @transform_5(%arg0: i32) -> (i32, i32) {
    %c0_i32 = arith.constant 0 : i32
    %c0_i32_0 = arith.constant 0 : i32
    %c0_i32_1 = arith.constant 0 : i32
    return %c0_i32, %c0_i32_0 : i32, i32
  }
  func.func @transform_6(%arg0: i32) -> (i32, i32) {
    %c0_i32 = arith.constant 0 : i32
    %c0_i32_0 = arith.constant 0 : i32
    return %c0_i32, %arg0 : i32, i32
  }
}

</mosaic_0001>

<llo_original>
// kernel: tpu_custom_call.1
$region0: #{tpu_custom_call.1}
  #allocation0 [shape = 'u32[]', space=smem, size = 0x4, offset = 0x4, fixed_abs, tag = 'smem constant byte address 0x4 - core index']
  #allocation1 [shape = 'u32[144,128]{1,0:T(1,128)}', space=vmem, size = 0x12000, scoped, tag = 'internal scratch']
  %s0 = inlined_call_operand.vmem [shape: f32[16,128], index: 0, kind: input, shape index: {}]
  %s1 = inlined_call_operand.vmem [shape: f32[1,128], index: 1, kind: input, shape index: {}]
  %s2 = inlined_call_operand.vmem [shape: bf16[48,16], index: 2, kind: input, shape index: {}]
  %s3 = inlined_call_operand.hbm [shape: bf16[128,384], index: 3, kind: input, shape index: {}]
  %s4 = inlined_call_operand.vmem [shape: bf16[16,48], index: 4, kind: input, shape index: {}]
  %s5 = inlined_call_operand.hbm [shape: bf16[384,128], index: 5, kind: input, shape index: {}]
  %s6 = inlined_call_operand.hbm [shape: f32[16,128], index: 6, kind: output, shape index: {}]
  %s7 = sld [smem:[#allocation0]]
  $region42: #{tpu_custom_call.1} parent=0
    _
  %s9 = ssub.s32 1, %s7
  %s10 = scalar_select 0, %s9, %s7
  $region1: #{tpu_custom_call.1} parent=0
    #allocation2 [shape = 'u8[98304]{0}', space=vmem, size = 0x18000, scoped, tag = 'input window, operand 3, single buffered']
    #allocation3 [shape = 's32[1]{0}', space=sflag, size = 0x4, scoped, tag = 'scoped memory for tpu_custom_call.1']
    #allocation4 [shape = 's32[1]{0}', space=sflag, size = 0x4, scoped, tag = 'scoped memory for tpu_custom_call.1']
    #allocation5 [shape = 'u8[98304]{0}', space=vmem, size = 0x18000, scoped, tag = 'input window, operand 5, single buffered']
    #allocation6 [shape = 's32[1]{0}', space=sflag, size = 0x4, scoped, tag = 'scoped memory for tpu_custom_call.1']
    #allocation7 [shape = 'u8[8192]{0}', space=vmem, size = 0x2000, scoped, tag = 'output window, operand 0, single buffered']
    %11 = vsyncpa [#allocation3], 0
    %12 = vsyncpa [#allocation6], 0
    %13 = vsyncpa [#allocation4], 0
    // Predicated region
    $region2: #{tpu_custom_call.1} parent=1 // pred_check
      _
    $region3: #{tpu_custom_call.1} parent=1 // pred_check_branch
      %15 = sbr.rel (0) target = $region5
    $region4: #{tpu_custom_call.1} parent=1 // pred_region
      _
    $region5: #{tpu_custom_call.1} parent=1 // pred_fallthru
      _
    // Predicated region
    $region6: #{tpu_custom_call.1} parent=1 // pred_check
      _
    $region7: #{tpu_custom_call.1} parent=1 // pred_check_branch
      %17 = sbr.rel (0) target = $region9
    $region8: #{tpu_custom_call.1} parent=1 // pred_region
      _
    $region9: #{tpu_custom_call.1} parent=1 // pred_fallthru
      _
    // Predicated region
    $region10: #{tpu_custom_call.1} parent=1 // pred_check
      _
    $region11: #{tpu_custom_call.1} parent=1 // pred_check_branch
      %19 = sbr.rel (0) target = $region13
    $region12: #{tpu_custom_call.1} parent=1 // pred_region
      _
    $region13: #{tpu_custom_call.1} parent=1 // pred_fallthru
      _
    // Predicated region
    $region14: #{tpu_custom_call.1} parent=1 // pred_check
      _
    $region15: #{tpu_custom_call.1} parent=1 // pred_check_branch
      %21 = sbr.rel (0) target = $region17
    $region16: #{tpu_custom_call.1} parent=1 // pred_region
      %s23 = ssub.s32 3072, 3072
      %24 = vsyncadd [#allocation3], %s23
      %s25 = sshll.u32 [#allocation2], 4
      %s26 = int_to_ptr.vmem [resolvable:$true] %s25
      %31 = dma.hbm_to_vmem [thread:$0]  %s3, 3072, %s26, [#allocation3], 192, 192, 12
    $region17: #{tpu_custom_call.1} parent=1 // pred_fallthru
      _
    // Predicated region
    $region18: #{tpu_custom_call.1} parent=1 // pred_check
      _
    $region19: #{tpu_custom_call.1} parent=1 // pred_check_branch
      %33 = sbr.rel (0) target = $region21
    $region20: #{tpu_custom_call.1} parent=1 // pred_region
      _
    $region21: #{tpu_custom_call.1} parent=1 // pred_fallthru
      _
    // Predicated region
    $region22: #{tpu_custom_call.1} parent=1 // pred_check
      _
    $region23: #{tpu_custom_call.1} parent=1 // pred_check_branch
      %35 = sbr.rel (0) target = $region25
    $region24: #{tpu_custom_call.1} parent=1 // pred_region
      %s37 = ssub.s32 3072, 3072
      %38 = vsyncadd [#allocation6], %s37
      %s39 = sshll.u32 [#allocation5], 4
      %s40 = int_to_ptr.vmem [resolvable:$true] %s39
      %45 = dma.hbm_to_vmem [thread:$0]  %s5, 3072, %s40, [#allocation6], 64, 64, 4
    $region25: #{tpu_custom_call.1} parent=1 // pred_fallthru
      _
    // Predicated region
    $region26: #{tpu_custom_call.1} parent=1 // pred_check
      _
    $region27: #{tpu_custom_call.1} parent=1 // pred_check_branch
      %47 = sbr.rel (0) target = $region29
    $region28: #{tpu_custom_call.1} parent=1 // pred_region
      %48 = dma.done [#allocation3], 3072
    $region29: #{tpu_custom_call.1} parent=1 // pred_fallthru
      _
    // Predicated region
    $region30: #{tpu_custom_call.1} parent=1 // pred_check
      _
    $region31: #{tpu_custom_call.1} parent=1 // pred_check_branch
      %50 = sbr.rel (0) target = $region33
    $region32: #{tpu_custom_call.1} parent=1 // pred_region
      %51 = dma.done [#allocation6], 3072
    $region33: #{tpu_custom_call.1} parent=1 // pred_fallthru
      _
    %v53 = vld [vmem:[%s0] sm:$0xff]
    %v54 = vld [vmem:[%s0 + $0x8] sm:$0xff]
    %v55 = vld [vmem:[%s1] sm:$0x1]
    %v57 = vlaneseq
    %v58 = vshrl.u32 %v57, 7
    %v59 = vsub.s32 0, %v58
    %v60 = vrot.slane %v55, %v59
    %v62 = vadd.f32 %v53, %v60
    %v63 = vadd.f32 %v54, %v60
    %v64 = vpack.c.bf16 %v63, %v62
    %v65 = vld [vmem:[%s2] sm:$0xf]
    %v66 = vld [vmem:[%s2 + $0x4] sm:$0xf]
    %v67 = vld [vmem:[%s2 + $0x8] sm:$0xf]
    %v68 = vld [vmem:[%s2 + $0xc] sm:$0xf]
    %v69 = vld [vmem:[%s2 + $0x10] sm:$0xf]
    %v70 = vld [vmem:[%s2 + $0x14] sm:$0xf]
    %v77 = vunpack.c.l.b16 %v65
    %v78 = vunpack.c.l.b16 %v66
    %v79 = vunpack.c.l.b16 %v67
    %v80 = vunpack.c.l.b16 %v68
    %v81 = vunpack.c.l.b16 %v69
    %v82 = vunpack.c.l.b16 %v70
    %v83 = vpack.c.b16 %v78, %v77
    %v84 = vpack.c.b16 %v80, %v79
    %v85 = vpack.c.b16 %v82, %v81
    %vm86 = vcmask 130048
    %v88 = vsel %vm86, %v83, 0
    %v91 = vsel %vm86, %v84, 0
    %v94 = vsel %vm86, %v85, 0
    %96 = vmatprep.subr.bf16.mxu0 0
    %97 = vmatpush1.bf16.msra.mxu0 %v64
    %98 = vmatprep.subr.bf16.mxu0 0
    %99 = vmatpush1.bf16.msra.mxu0 0
    %100 = vmatprep.subr.bf16.mxu0 0
    %101 = vmatpush1.bf16.msra.mxu0 0
    %102 = vmatprep.subr.bf16.mxu0 0
    %103 = vmatpush1.bf16.msra.mxu0 0
    %104 = vmatprep.subr.bf16.mxu0 0
    %105 = vmatpush1.bf16.msra.mxu0 0
    %106 = vmatprep.subr.bf16.mxu0 0
    %107 = vmatpush1.bf16.msra.mxu0 0
    %108 = vmatprep.subr.bf16.mxu0 0
    %109 = vmatpush1.bf16.msra.mxu0 0
    %110 = vmatprep.subr.bf16.mxu0 0
    %111 = vmatpush1.bf16.msra.mxu0 0
    %112 = vmatprep.subr.bf16.mxu0 0
    %113 = vmatpush1.bf16.msra.mxu0 0
    %114 = vmatprep.subr.bf16.mxu0 0
    %115 = vmatpush1.bf16.msra.mxu0 0
    %116 = vmatprep.subr.bf16.mxu0 0
    %117 = vmatpush1.bf16.msra.mxu0 0
    %118 = vmatprep.subr.bf16.mxu0 0
    %119 = vmatpush1.bf16.msra.mxu0 0
    %120 = vmatprep.subr.bf16.mxu0 0
    %121 = vmatpush1.bf16.msra.mxu0 0
    %122 = vmatprep.subr.bf16.mxu0 0
    %123 = vmatpush1.bf16.msra.mxu0 0
    %124 = vmatprep.subr.bf16.mxu0 0
    %125 = vmatpush1.bf16.msra.mxu0 0
    %126 = vmatprep.subr.bf16.mxu0 0
    %127 = vmatpush1.bf16.msra.mxu0 0
    %128 = vmatprep.mubr.bf16.mxu0 0
    %129 = vmatmul.mubr.bf16.gmra.mrb[0].mxu0 %v88
    %v130 = vpop.f32.mrb[0].mxu0
    %v131 = vadd.f32 0.0, %v130
    %v132 = vpop.f32.mrb[0].mxu0
    %v133 = vpop.f32.mrb[0].mxu0
    %v134 = vadd.f32 0.0, %v133
    %v135 = vpop.f32.mrb[0].mxu0
    %136 = vmatprep.mubr.bf16.mxu0 0
    %137 = vmatmul.mubr.bf16.gmra.mrb[0].mxu0 %v91
    %v138 = vpop.f32.mrb[0].mxu0
    %v139 = vadd.f32 0.0, %v138
    %v140 = vpop.f32.mrb[0].mxu0
    %v141 = vpop.f32.mrb[0].mxu0
    %v142 = vadd.f32 0.0, %v141
    %v143 = vpop.f32.mrb[0].mxu0
    %144 = vmatprep.mubr.bf16.mxu0 0
    %145 = vmatmul.mubr.bf16.gmra.mrb[0].mxu0 %v94
    %v146 = vpop.f32.mrb[0].mxu0
    %v147 = vadd.f32 0.0, %v146
    %v148 = vpop.f32.mrb[0].mxu0
    %v149 = vpop.f32.mrb[0].mxu0
    %v150 = vadd.f32 0.0, %v149
    %v151 = vpop.f32.mrb[0].mxu0
    %152 = vdwg.mxu0
    %v153 = vpack.c.bf16 %v134, %v131
    %v154 = vpack.c.bf16 %v142, %v139
    %v155 = vpack.c.bf16 %v150, %v147
    %v156 = vld [vmem:[#allocation2] sm:$0xff]
    %v157 = vld [vmem:[#allocation2 + $0x8] sm:$0xf]
    %v158 = vld [vmem:[#allocation2 + $0xc] sm:$0xff]
    %v159 = vld [vmem:[#allocation2 + $0x14] sm:$0xf]
    %v160 = vld [vmem:[#allocation2 + $0x18] sm:$0xff]
    %v161 = vld [vmem:[#allocation2 + $0x20] sm:$0xf]
    %v162 = vld [vmem:[#allocation2 + $0x24] sm:$0xff]
    %v163 = vld [vmem:[#allocation2 + $0x2c] sm:$0xf]
    %v164 = vld [vmem:[#allocation2 + $0x30] sm:$0xff]
    %v165 = vld [vmem:[#allocation2 + $0x38] sm:$0xf]
    %v166 = vld [vmem:[#allocation2 + $0x3c] sm:$0xff]
    %v167 = vld [vmem:[#allocation2 + $0x44] sm:$0xf]
    %v168 = vld [vmem:[#allocation2 + $0x48] sm:$0xff]
    %v169 = vld [vmem:[#allocation2 + $0x50] sm:$0xf]
    %v170 = vld [vmem:[#allocation2 + $0x54] sm:$0xff]
    %v171 = vld [vmem:[#allocation2 + $0x5c] sm:$0xf]
    %v172 = vld [vmem:[#allocation2 + $0x60] sm:$0xff]
    %v173 = vld [vmem:[#allocation2 + $0x68] sm:$0xf]
    %v174 = vld [vmem:[#allocation2 + $0x6c] sm:$0xff]
    %v175 = vld [vmem:[#allocation2 + $0x74] sm:$0xf]
    %v176 = vld [vmem:[#allocation2 + $0x78] sm:$0xff]
    %v177 = vld [vmem:[#allocation2 + $0x80] sm:$0xf]
    %v178 = vld [vmem:[#allocation2 + $0x84] sm:$0xff]
    %v179 = vld [vmem:[#allocation2 + $0x8c] sm:$0xf]
    %v180 = vld [vmem:[#allocation2 + $0x90] sm:$0xff]
    %v181 = vld [vmem:[#allocation2 + $0x98] sm:$0xf]
    %v182 = vld [vmem:[#allocation2 + $0x9c] sm:$0xff]
    %v183 = vld [vmem:[#allocation2 + $0xa4] sm:$0xf]
    %v184 = vld [vmem:[#allocation2 + $0xa8] sm:$0xff]
    %v185 = vld [vmem:[#allocation2 + $0xb0] sm:$0xf]
    %v186 = vld [vmem:[#allocation2 + $0xb4] sm:$0xff]
    %v187 = vld [vmem:[#allocation2 + $0xbc] sm:$0xf]
    %v220 = vunpack.c.l.b16 %v156
    %v221 = vunpack.c.h.b16 %v156
    %v222 = vunpack.c.l.b16 %v157
    %v223 = vunpack.c.l.b16 %v158
    %v224 = vunpack.c.h.b16 %v158
    %v225 = vunpack.c.l.b16 %v159
    %v226 = vunpack.c.l.b16 %v160
    %v227 = vunpack.c.h.b16 %v160
    %v228 = vunpack.c.l.b16 %v161
    %v229 = vunpack.c.l.b16 %v162
    %v230 = vunpack.c.h.b16 %v162
    %v231 = vunpack.c.l.b16 %v163
    %v232 = vunpack.c.l.b16 %v164
    %v233 = vunpack.c.h.b16 %v164
    %v234 = vunpack.c.l.b16 %v165
    %v235 = vunpack.c.l.b16 %v166
    %v236 = vunpack.c.h.b16 %v166
    %v237 = vunpack.c.l.b16 %v167
    %v238 = vunpack.c.l.b16 %v168
    %v239 = vunpack.c.h.b16 %v168
    %v240 = vunpack.c.l.b16 %v169
    %v241 = vunpack.c.l.b16 %v170
    %v242 = vunpack.c.h.b16 %v170
    %v243 = vunpack.c.l.b16 %v171
    %v244 = vunpack.c.l.b16 %v172
    %v245 = vunpack.c.h.b16 %v172
    %v246 = vunpack.c.l.b16 %v173
    %v247 = vunpack.c.l.b16 %v174
    %v248 = vunpack.c.h.b16 %v174
    %v249 = vunpack.c.l.b16 %v175
    %v250 = vunpack.c.l.b16 %v176
    %v251 = vunpack.c.h.b16 %v176
    %v252 = vunpack.c.l.b16 %v177
    %v253 = vunpack.c.l.b16 %v178
    %v254 = vunpack.c.h.b16 %v178
    %v255 = vunpack.c.l.b16 %v179
    %v256 = vunpack.c.l.b16 %v180
    %v257 = vunpack.c.h.b16 %v180
    %v258 = vunpack.c.l.b16 %v181
    %v259 = vunpack.c.l.b16 %v182
    %v260 = vunpack.c.h.b16 %v182
    %v261 = vunpack.c.l.b16 %v183
    %v262 = vunpack.c.l.b16 %v184
    %v263 = vunpack.c.h.b16 %v184
    %v264 = vunpack.c.l.b16 %v185
    %v265 = vunpack.c.l.b16 %v186
    %v266 = vunpack.c.h.b16 %v186
    %v267 = vunpack.c.l.b16 %v187
    %v268 = vpack.c.b16 %v223, %v220
    %v269 = vpack.c.b16 %v224, %v221
    %v270 = vpack.c.b16 %v225, %v222
    %v271 = vpack.c.b16 %v229, %v226
    %v272 = vpack.c.b16 %v230, %v227
    %v273 = vpack.c.b16 %v231, %v228
    %v274 = vpack.c.b16 %v235, %v232
    %v275 = vpack.c.b16 %v236, %v233
    %v276 = vpack.c.b16 %v237, %v234
    %v277 = vpack.c.b16 %v241, %v238
    %v278 = vpack.c.b16 %v242, %v239
    %v279 = vpack.c.b16 %v243, %v240
    %v280 = vpack.c.b16 %v247, %v244
    %v281 = vpack.c.b16 %v248, %v245
    %v282 = vpack.c.b16 %v249, %v246
    %v283 = vpack.c.b16 %v253, %v250
    %v284 = vpack.c.b16 %v254, %v251
    %v285 = vpack.c.b16 %v255, %v252
    %v286 = vpack.c.b16 %v259, %v256
    %v287 = vpack.c.b16 %v260, %v257
    %v288 = vpack.c.b16 %v261, %v258
    %v289 = vpack.c.b16 %v265, %v262
    %v290 = vpack.c.b16 %v266, %v263
    %v291 = vpack.c.b16 %v267, %v264
    %316 = vmatprep.subr.bf16.mxu0 %v269
    %317 = vmatpush1.bf16.msra.mxu0 %v268
    %318 = vmatprep.subr.bf16.mxu0 %v272
    %319 = vmatpush1.bf16.msra.mxu0 %v271
    %320 = vmatprep.subr.bf16.mxu0 %v275
    %321 = vmatpush1.bf16.msra.mxu0 %v274
    %322 = vmatprep.subr.bf16.mxu0 %v278
    %323 = vmatpush1.bf16.msra.mxu0 %v277
    %324 = vmatprep.subr.bf16.mxu0 %v281
    %325 = vmatpush1.bf16.msra.mxu0 %v280
    %326 = vmatprep.subr.bf16.mxu0 %v284
    %327 = vmatpush1.bf16.msra.mxu0 %v283
    %328 = vmatprep.subr.bf16.mxu0 %v287
    %329 = vmatpush1.bf16.msra.mxu0 %v286
    %330 = vmatprep.subr.bf16.mxu0 %v290
    %331 = vmatpush1.bf16.msra.mxu0 %v289
    %332 = vmatprep.subr.bf16.mxu0 0
    %333 = vmatpush1.bf16.msra.mxu0 0
    %334 = vmatprep.subr.bf16.mxu0 0
    %335 = vmatpush1.bf16.msra.mxu0 0
    %336 = vmatprep.subr.bf16.mxu0 0
    %337 = vmatpush1.bf16.msra.mxu0 0
    %338 = vmatprep.subr.bf16.mxu0 0
    %339 = vmatpush1.bf16.msra.mxu0 0
    %340 = vmatprep.subr.bf16.mxu0 0
    %341 = vmatpush1.bf16.msra.mxu0 0
    %342 = vmatprep.subr.bf16.mxu0 0
    %343 = vmatpush1.bf16.msra.mxu0 0
    %344 = vmatprep.subr.bf16.mxu0 0
    %345 = vmatpush1.bf16.msra.mxu0 0
    %346 = vmatprep.subr.bf16.mxu0 0
    %347 = vmatpush1.bf16.msra.mxu0 0
    %348 = vmatprep.mubr.bf16.mxu0 0
    %349 = vmatmul.mubr.bf16.gmra.mrb[0].mxu0 %v153
    %v350 = vpop.f32.mrb[0].mxu0
    %v351 = vadd.f32 0.0, %v350
    %v352 = vpop.f32.mrb[0].mxu0
    %v353 = vadd.f32 0.0, %v352
    %v354 = vpop.f32.mrb[0].mxu0
    %v355 = vadd.f32 0.0, %v354
    %v356 = vpop.f32.mrb[0].mxu0
    %v357 = vadd.f32 0.0, %v356
    %358 = vmatprep.mubr.bf16.mxu0 0
    %359 = vmatmul.mubr.bf16.gmra.mrb[0].mxu0 %v154
    %v360 = vpop.f32.mrb[0].mxu0
    %v361 = vadd.f32 0.0, %v360
    %v362 = vpop.f32.mrb[0].mxu0
    %v363 = vadd.f32 0.0, %v362
    %v364 = vpop.f32.mrb[0].mxu0
    %v365 = vadd.f32 0.0, %v364
    %v366 = vpop.f32.mrb[0].mxu0
    %v367 = vadd.f32 0.0, %v366
    %368 = vmatprep.mubr.bf16.mxu0 0
    %369 = vmatmul.mubr.bf16.gmra.mrb[0].mxu0 %v155
    %v370 = vpop.f32.mrb[0].mxu0
    %v371 = vadd.f32 0.0, %v370
    %v372 = vpop.f32.mrb[0].mxu0
    %v373 = vadd.f32 0.0, %v372
    %v374 = vpop.f32.mrb[0].mxu0
    %v375 = vadd.f32 0.0, %v374
    %v376 = vpop.f32.mrb[0].mxu0
    %v377 = vadd.f32 0.0, %v376
    %378 = vdwg.mxu0
    %379 = vmatprep.subr.bf16.mxu0 0
    %380 = vmatpush1.bf16.msra.mxu0 %v270
    %381 = vmatprep.subr.bf16.mxu0 0
    %382 = vmatpush1.bf16.msra.mxu0 %v273
    %383 = vmatprep.subr.bf16.mxu0 0
    %384 = vmatpush1.bf16.msra.mxu0 %v276
    %385 = vmatprep.subr.bf16.mxu0 0
    %386 = vmatpush1.bf16.msra.mxu0 %v279
    %387 = vmatprep.subr.bf16.mxu0 0
    %388 = vmatpush1.bf16.msra.mxu0 %v282
    %389 = vmatprep.subr.bf16.mxu0 0
    %390 = vmatpush1.bf16.msra.mxu0 %v285
    %391 = vmatprep.subr.bf16.mxu0 0
    %392 = vmatpush1.bf16.msra.mxu0 %v288
    %393 = vmatprep.subr.bf16.mxu0 0
    %394 = vmatpush1.bf16.msra.mxu0 %v291
    %395 = vmatprep.subr.bf16.mxu0 0
    %396 = vmatpush1.bf16.msra.mxu0 0
    %397 = vmatprep.subr.bf16.mxu0 0
    %398 = vmatpush1.bf16.msra.mxu0 0
    %399 = vmatprep.subr.bf16.mxu0 0
    %400 = vmatpush1.bf16.msra.mxu0 0
    %401 = vmatprep.subr.bf16.mxu0 0
    %402 = vmatpush1.bf16.msra.mxu0 0
    %403 = vmatprep.subr.bf16.mxu0 0
    %404 = vmatpush1.bf16.msra.mxu0 0
    %405 = vmatprep.subr.bf16.mxu0 0
    %406 = vmatpush1.bf16.msra.mxu0 0
    %407 = vmatprep.subr.bf16.mxu0 0
    %408 = vmatpush1.bf16.msra.mxu0 0
    %409 = vmatprep.subr.bf16.mxu0 0
    %410 = vmatpush1.bf16.msra.mxu0 0
    %411 = vmatprep.mubr.bf16.mxu0 0
    %412 = vmatmul.mubr.bf16.gmra.mrb[0].mxu0 %v153
    %v413 = vpop.f32.mrb[0].mxu0
    %v414 = vadd.f32 0.0, %v413
    %v415 = vpop.f32.mrb[0].mxu0
    %v416 = vpop.f32.mrb[0].mxu0
    %v417 = vadd.f32 0.0, %v416
    %v418 = vpop.f32.mrb[0].mxu0
    %419 = vmatprep.mubr.bf16.mxu0 0
    %420 = vmatmul.mubr.bf16.gmra.mrb[0].mxu0 %v154
    %v421 = vpop.f32.mrb[0].mxu0
    %v422 = vadd.f32 0.0, %v421
    %v423 = vpop.f32.mrb[0].mxu0
    %v424 = vpop.f32.mrb[0].mxu0
    %v425 = vadd.f32 0.0, %v424
    %v426 = vpop.f32.mrb[0].mxu0
    %427 = vmatprep.mubr.bf16.mxu0 0
    %428 = vmatmul.mubr.bf16.gmra.mrb[0].mxu0 %v155
    %v429 = vpop.f32.mrb[0].mxu0
    %v430 = vadd.f32 0.0, %v429
    %v431 = vpop.f32.mrb[0].mxu0
    %v432 = vpop.f32.mrb[0].mxu0
    %v433 = vadd.f32 0.0, %v432
    %v434 = vpop.f32.mrb[0].mxu0
    %435 = vdwg.mxu0
    %vm436 = vcmp.ge.f32.partialorder %v351, 0.0
    %vm437 = vcmp.ge.f32.partialorder %v353, 0.0
    %vm438 = vcmp.ge.f32.partialorder %v414, 0.0
    %vm439 = vcmp.ge.f32.partialorder %v355, 0.0
    %vm440 = vcmp.ge.f32.partialorder %v357, 0.0
    %vm441 = vcmp.ge.f32.partialorder %v417, 0.0
    %vm442 = vcmp.ge.f32.partialorder %v361, 0.0
    %vm443 = vcmp.ge.f32.partialorder %v363, 0.0
    %vm444 = vcmp.ge.f32.partialorder %v422, 0.0
    %vm445 = vcmp.ge.f32.partialorder %v365, 0.0
    %vm446 = vcmp.ge.f32.partialorder %v367, 0.0
    %vm447 = vcmp.ge.f32.partialorder %v425, 0.0
    %vm448 = vcmp.ge.f32.partialorder %v371, 0.0
    %vm449 = vcmp.ge.f32.partialorder %v373, 0.0
    %vm450 = vcmp.ge.f32.partialorder %v430, 0.0
    %vm451 = vcmp.ge.f32.partialorder %v375, 0.0
    %vm452 = vcmp.ge.f32.partialorder %v377, 0.0
    %vm453 = vcmp.ge.f32.partialorder %v433, 0.0
    %v454 = vsel %vm436, 1.4142135, 0.28284273
    %v455 = vsel %vm437, 1.4142135, 0.28284273
    %v456 = vsel %vm438, 1.4142135, 0.28284273
    %v457 = vsel %vm439, 1.4142135, 0.28284273
    %v458 = vsel %vm440, 1.4142135, 0.28284273
    %v459 = vsel %vm441, 1.4142135, 0.28284273
    %v460 = vsel %vm442, 1.4142135, 0.28284273
    %v461 = vsel %vm443, 1.4142135, 0.28284273
    %v462 = vsel %vm444, 1.4142135, 0.28284273
    %v463 = vsel %vm445, 1.4142135, 0.28284273
    %v464 = vsel %vm446, 1.4142135, 0.28284273
    %v465 = vsel %vm447, 1.4142135, 0.28284273
    %v466 = vsel %vm448, 1.4142135, 0.28284273
    %v467 = vsel %vm449, 1.4142135, 0.28284273
    %v468 = vsel %vm450, 1.4142135, 0.28284273
    %v469 = vsel %vm451, 1.4142135, 0.28284273
    %v470 = vsel %vm452, 1.4142135, 0.28284273
    %v471 = vsel %vm453, 1.4142135, 0.28284273
    %v472 = vmul.f32 %v351, %v454
    %v473 = vmul.f32 %v353, %v455
    %v474 = vmul.f32 %v414, %v456
    %v475 = vmul.f32 %v355, %v457
    %v476 = vmul.f32 %v357, %v458
    %v477 = vmul.f32 %v417, %v459
    %v478 = vmul.f32 %v361, %v460
    %v479 = vmul.f32 %v363, %v461
    %v480 = vmul.f32 %v422, %v462
    %v481 = vmul.f32 %v365, %v463
    %v482 = vmul.f32 %v367, %v464
    %v483 = vmul.f32 %v425, %v465
    %v484 = vmul.f32 %v371, %v466
    %v485 = vmul.f32 %v373, %v467
    %v486 = vmul.f32 %v430, %v468
    %v487 = vmul.f32 %v375, %v469
    %v488 = vmul.f32 %v377, %v470
    %v489 = vmul.f32 %v433, %v471
    %v490 = vmax.f32 %v472, -256.0
    %v491 = vmax.f32 %v473, -256.0
    %v492 = vmax.f32 %v474, -256.0
    %v493 = vmax.f32 %v475, -256.0
    %v494 = vmax.f32 %v476, -256.0
    %v495 = vmax.f32 %v477, -256.0
    %v496 = vmax.f32 %v478, -256.0
    %v497 = vmax.f32 %v479, -256.0
    %v498 = vmax.f32 %v480, -256.0
    %v499 = vmax.f32 %v481, -256.0
    %v500 = vmax.f32 %v482, -256.0
    %v501 = vmax.f32 %v483, -256.0
    %v502 = vmax.f32 %v484, -256.0
    %v503 = vmax.f32 %v485, -256.0
    %v504 = vmax.f32 %v486, -256.0
    %v505 = vmax.f32 %v487, -256.0
    %v506 = vmax.f32 %v488, -256.0
    %v507 = vmax.f32 %v489, -256.0
    %v508 = vmin.f32 %v490, 256.0
    %v509 = vmin.f32 %v491, 256.0
    %v510 = vmin.f32 %v492, 256.0
    %v511 = vmin.f32 %v493, 256.0
    %v512 = vmin.f32 %v494, 256.0
    %v513 = vmin.f32 %v495, 256.0
    %v514 = vmin.f32 %v496, 256.0
    %v515 = vmin.f32 %v497, 256.0
    %v516 = vmin.f32 %v498, 256.0
    %v517 = vmin.f32 %v499, 256.0
    %v518 = vmin.f32 %v500, 256.0
    %v519 = vmin.f32 %v501, 256.0
    %v520 = vmin.f32 %v502, 256.0
    %v521 = vmin.f32 %v503, 256.0
    %v522 = vmin.f32 %v504, 256.0
    %v523 = vmin.f32 %v505, 256.0
    %v524 = vmin.f32 %v506, 256.0
    %v525 = vmin.f32 %v507, 256.0
    %v526 = vld [vmem:[%s4] sm:$0xf]
    %v527 = vld [vmem:[%s4 + $0x4] sm:$0xf]
    %v528 = vpack.c.bf16 %v511, %v508
    %v529 = vpack.c.bf16 %v512, %v509
    %v530 = vpack.c.bf16 %v513, %v510
    %v531 = vpack.c.bf16 %v517, %v514
    %v532 = vpack.c.bf16 %v518, %v515
    %v533 = vpack.c.bf16 %v519, %v516
    %v534 = vpack.c.bf16 %v523, %v520
    %v535 = vpack.c.bf16 %v524, %v521
    %v536 = vpack.c.bf16 %v525, %v522
    %v539 = vunpack.c.l.b16 %v526
    %v540 = vunpack.c.l.b16 %v527
    %v541 = vpack.c.b16 %v540, %v539
    %vm542 = vcmask 392192
    %v544 = vsel %vm542, %v541, 0
    %546 = vmatprep.subr.bf16.mxu0 %v529
    %547 = vmatpush1.bf16.msra.mxu0 %v528
    %548 = vmatprep.subr.bf16.mxu0 %v532
    %549 = vmatpush1.bf16.msra.mxu0 %v531
    %550 = vmatprep.subr.bf16.mxu0 %v535
    %551 = vmatpush1.bf16.msra.mxu0 %v534
    %552 = vmatprep.subr.bf16.mxu0 0
    %553 = vmatpush1.bf16.msra.mxu0 0
    %554 = vmatprep.subr.bf16.mxu0 0
    %555 = vmatpush1.bf16.msra.mxu0 0
    %556 = vmatprep.subr.bf16.mxu0 0
    %557 = vmatpush1.bf16.msra.mxu0 0
    %558 = vmatprep.subr.bf16.mxu0 0
    %559 = vmatpush1.bf16.msra.mxu0 0
    %560 = vmatprep.subr.bf16.mxu0 0
    %561 = vmatpush1.bf16.msra.mxu0 0
    %562 = vmatprep.subr.bf16.mxu0 0
    %563 = vmatpush1.bf16.msra.mxu0 0
    %564 = vmatprep.subr.bf16.mxu0 0
    %565 = vmatpush1.bf16.msra.mxu0 0
    %566 = vmatprep.subr.bf16.mxu0 0
    %567 = vmatpush1.bf16.msra.mxu0 0
    %568 = vmatprep.subr.bf16.mxu0 0
    %569 = vmatpush1.bf16.msra.mxu0 0
    %570 = vmatprep.subr.bf16.mxu0 0
    %571 = vmatpush1.bf16.msra.mxu0 0
    %572 = vmatprep.subr.bf16.mxu0 0
    %573 = vmatpush1.bf16.msra.mxu0 0
    %574 = vmatprep.subr.bf16.mxu0 0
    %575 = vmatpush1.bf16.msra.mxu0 0
    %576 = vmatprep.subr.bf16.mxu0 0
    %577 = vmatpush1.bf16.msra.mxu0 0
    %578 = vmatprep.mubr.bf16.mxu0 0
    %579 = vmatmul.mubr.bf16.gmra.mrb[0].mxu0 %v544
    %v580 = vpop.f32.mrb[0].mxu0
    %v581 = vadd.f32 0.0, %v580
    %v582 = vpop.f32.mrb[0].mxu0
    %v583 = vadd.f32 0.0, %v582
    %v584 = vpop.f32.mrb[0].mxu0
    %v585 = vadd.f32 0.0, %v584
    %v586 = vpop.f32.mrb[0].mxu0
    %v587 = vadd.f32 0.0, %v586
    %588 = vdwg.mxu0
    %589 = vmatprep.subr.bf16.mxu0 0
    %590 = vmatpush1.bf16.msra.mxu0 %v530
    %591 = vmatprep.subr.bf16.mxu0 0
    %592 = vmatpush1.bf16.msra.mxu0 %v533
    %593 = vmatprep.subr.bf16.mxu0 0
    %594 = vmatpush1.bf16.msra.mxu0 %v536
    %595 = vmatprep.subr.bf16.mxu0 0
    %596 = vmatpush1.bf16.msra.mxu0 0
    %597 = vmatprep.subr.bf16.mxu0 0
    %598 = vmatpush1.bf16.msra.mxu0 0
    %599 = vmatprep.subr.bf16.mxu0 0
    %600 = vmatpush1.bf16.msra.mxu0 0
    %601 = vmatprep.subr.bf16.mxu0 0
    %602 = vmatpush1.bf16.msra.mxu0 0
    %603 = vmatprep.subr.bf16.mxu0 0
    %604 = vmatpush1.bf16.msra.mxu0 0
    %605 = vmatprep.subr.bf16.mxu0 0
    %606 = vmatpush1.bf16.msra.mxu0 0
    %607 = vmatprep.subr.bf16.mxu0 0
    %608 = vmatpush1.bf16.msra.mxu0 0
    %609 = vmatprep.subr.bf16.mxu0 0
    %610 = vmatpush1.bf16.msra.mxu0 0
    %611 = vmatprep.subr.bf16.mxu0 0
    %612 = vmatpush1.bf16.msra.mxu0 0
    %613 = vmatprep.subr.bf16.mxu0 0
    %614 = vmatpush1.bf16.msra.mxu0 0
    %615 = vmatprep.subr.bf16.mxu0 0
    %616 = vmatpush1.bf16.msra.mxu0 0
    %617 = vmatprep.subr.bf16.mxu0 0
    %618 = vmatpush1.bf16.msra.mxu0 0
    %619 = vmatprep.subr.bf16.mxu0 0
    %620 = vmatpush1.bf16.msra.mxu0 0
    %621 = vmatprep.mubr.bf16.mxu0 0
    %622 = vmatmul.mubr.bf16.gmra.mrb[0].mxu0 %v544
    %v623 = vpop.f32.mrb[0].mxu0
    %v624 = vadd.f32 0.0, %v623
    %v625 = vpop.f32.mrb[0].mxu0
    %v626 = vpop.f32.mrb[0].mxu0
    %v627 = vadd.f32 0.0, %v626
    %v628 = vpop.f32.mrb[0].mxu0
    %629 = vdwg.mxu0
    %v630 = vpack.c.bf16 %v585, %v581
    %v631 = vpack.c.bf16 %v587, %v583
    %v632 = vpack.c.bf16 %v627, %v624
    %v633 = vld [vmem:[#allocation5] sm:$0xf]
    %v634 = vld [vmem:[#allocation5 + $0x4] sm:$0xf]
    %v635 = vld [vmem:[#allocation5 + $0x8] sm:$0xf]
    %v636 = vld [vmem:[#allocation5 + $0xc] sm:$0xf]
    %v637 = vld [vmem:[#allocation5 + $0x10] sm:$0xf]
    %v638 = vld [vmem:[#allocation5 + $0x14] sm:$0xf]
    %v639 = vld [vmem:[#allocation5 + $0x18] sm:$0xf]
    %v640 = vld [vmem:[#allocation5 + $0x1c] sm:$0xf]
    %v641 = vld [vmem:[#allocation5 + $0x20] sm:$0xf]
    %v642 = vld [vmem:[#allocation5 + $0x24] sm:$0xf]
    %v643 = vld [vmem:[#allocation5 + $0x28] sm:$0xf]
    %v644 = vld [vmem:[#allocation5 + $0x2c] sm:$0xf]
    %v645 = vld [vmem:[#allocation5 + $0x30] sm:$0xf]
    %v646 = vld [vmem:[#allocation5 + $0x34] sm:$0xf]
    %v647 = vld [vmem:[#allocation5 + $0x38] sm:$0xf]
    %v648 = vld [vmem:[#allocation5 + $0x3c] sm:$0xf]
    %v649 = vld [vmem:[#allocation5 + $0x40] sm:$0xf]
    %v650 = vld [vmem:[#allocation5 + $0x44] sm:$0xf]
    %v651 = vld [vmem:[#allocation5 + $0x48] sm:$0xf]
    %v652 = vld [vmem:[#allocation5 + $0x4c] sm:$0xf]
    %v653 = vld [vmem:[#allocation5 + $0x50] sm:$0xf]
    %v654 = vld [vmem:[#allocation5 + $0x54] sm:$0xf]
    %v655 = vld [vmem:[#allocation5 + $0x58] sm:$0xf]
    %v656 = vld [vmem:[#allocation5 + $0x5c] sm:$0xf]
    %v657 = vld [vmem:[#allocation5 + $0x60] sm:$0xf]
    %v658 = vld [vmem:[#allocation5 + $0x64] sm:$0xf]
    %v659 = vld [vmem:[#allocation5 + $0x68] sm:$0xf]
    %v660 = vld [vmem:[#allocation5 + $0x6c] sm:$0xf]
    %v661 = vld [vmem:[#allocation5 + $0x70] sm:$0xf]
    %v662 = vld [vmem:[#allocation5 + $0x74] sm:$0xf]
    %v663 = vld [vmem:[#allocation5 + $0x78] sm:$0xf]
    %v664 = vld [vmem:[#allocation5 + $0x7c] sm:$0xf]
    %v665 = vld [vmem:[#allocation5 + $0x80] sm:$0xf]
    %v666 = vld [vmem:[#allocation5 + $0x84] sm:$0xf]
    %v667 = vld [vmem:[#allocation5 + $0x88] sm:$0xf]
    %v668 = vld [vmem:[#allocation5 + $0x8c] sm:$0xf]
    %v669 = vld [vmem:[#allocation5 + $0x90] sm:$0xf]
    %v670 = vld [vmem:[#allocation5 + $0x94] sm:$0xf]
    %v671 = vld [vmem:[#allocation5 + $0x98] sm:$0xf]
    %v672 = vld [vmem:[#allocation5 + $0x9c] sm:$0xf]
    %v673 = vld [vmem:[#allocation5 + $0xa0] sm:$0xf]
    %v674 = vld [vmem:[#allocation5 + $0xa4] sm:$0xf]
    %v675 = vld [vmem:[#allocation5 + $0xa8] sm:$0xf]
    %v676 = vld [vmem:[#allocation5 + $0xac] sm:$0xf]
    %v677 = vld [vmem:[#allocation5 + $0xb0] sm:$0xf]
    %v678 = vld [vmem:[#allocation5 + $0xb4] sm:$0xf]
    %v679 = vld [vmem:[#allocation5 + $0xb8] sm:$0xf]
    %v680 = vld [vmem:[#allocation5 + $0xbc] sm:$0xf]
    %v729 = vunpack.c.l.b16 %v633
    %v730 = vunpack.c.l.b16 %v634
    %v731 = vunpack.c.l.b16 %v635
    %v732 = vunpack.c.l.b16 %v636
    %v733 = vunpack.c.l.b16 %v637
    %v734 = vunpack.c.l.b16 %v638
    %v735 = vunpack.c.l.b16 %v639
    %v736 = vunpack.c.l.b16 %v640
    %v737 = vunpack.c.l.b16 %v641
    %v738 = vunpack.c.l.b16 %v642
    %v739 = vunpack.c.l.b16 %v643
    %v740 = vunpack.c.l.b16 %v644
    %v741 = vunpack.c.l.b16 %v645
    %v742 = vunpack.c.l.b16 %v646
    %v743 = vunpack.c.l.b16 %v647
    %v744 = vunpack.c.l.b16 %v648
    %v745 = vunpack.c.l.b16 %v649
    %v746 = vunpack.c.l.b16 %v650
    %v747 = vunpack.c.l.b16 %v651
    %v748 = vunpack.c.l.b16 %v652
    %v749 = vunpack.c.l.b16 %v653
    %v750 = vunpack.c.l.b16 %v654
    %v751 = vunpack.c.l.b16 %v655
    %v752 = vunpack.c.l.b16 %v656
    %v753 = vunpack.c.l.b16 %v657
    %v754 = vunpack.c.l.b16 %v658
    %v755 = vunpack.c.l.b16 %v659
    %v756 = vunpack.c.l.b16 %v660
    %v757 = vunpack.c.l.b16 %v661
    %v758 = vunpack.c.l.b16 %v662
    %v759 = vunpack.c.l.b16 %v663
    %v760 = vunpack.c.l.b16 %v664
    %v761 = vunpack.c.l.b16 %v665
    %v762 = vunpack.c.l.b16 %v666
    %v763 = vunpack.c.l.b16 %v667
    %v764 = vunpack.c.l.b16 %v668
    %v765 = vunpack.c.l.b16 %v669
    %v766 = vunpack.c.l.b16 %v670
    %v767 = vunpack.c.l.b16 %v671
    %v768 = vunpack.c.l.b16 %v672
    %v769 = vunpack.c.l.b16 %v673
    %v770 = vunpack.c.l.b16 %v674
    %v771 = vunpack.c.l.b16 %v675
    %v772 = vunpack.c.l.b16 %v676
    %v773 = vunpack.c.l.b16 %v677
    %v774 = vunpack.c.l.b16 %v678
    %v775 = vunpack.c.l.b16 %v679
    %v776 = vunpack.c.l.b16 %v680
    %v777 = vpack.c.b16 %v730, %v729
    %v778 = vpack.c.b16 %v732, %v731
    %v779 = vpack.c.b16 %v734, %v733
    %v780 = vpack.c.b16 %v736, %v735
    %v781 = vpack.c.b16 %v738, %v737
    %v782 = vpack.c.b16 %v740, %v739
    %v783 = vpack.c.b16 %v742, %v741
    %v784 = vpack.c.b16 %v744, %v743
    %v785 = vpack.c.b16 %v746, %v745
    %v786 = vpack.c.b16 %v748, %v747
    %v787 = vpack.c.b16 %v750, %v749
    %v788 = vpack.c.b16 %v752, %v751
    %v789 = vpack.c.b16 %v754, %v753
    %v790 = vpack.c.b16 %v756, %v755
    %v791 = vpack.c.b16 %v758, %v757
    %v792 = vpack.c.b16 %v760, %v759
    %v793 = vpack.c.b16 %v762, %v761
    %v794 = vpack.c.b16 %v764, %v763
    %v795 = vpack.c.b16 %v766, %v765
    %v796 = vpack.c.b16 %v768, %v767
    %v797 = vpack.c.b16 %v770, %v769
    %v798 = vpack.c.b16 %v772, %v771
    %v799 = vpack.c.b16 %v774, %v773
    %v800 = vpack.c.b16 %v776, %v775
    %825 = vmatprep.subr.bf16.mxu0 0
    %826 = vmatpush1.bf16.msra.mxu0 %v777
    %827 = vmatprep.subr.bf16.mxu0 0
    %828 = vmatpush1.bf16.msra.mxu0 %v778
    %829 = vmatprep.subr.bf16.mxu0 0
    %830 = vmatpush1.bf16.msra.mxu0 %v779
    %831 = vmatprep.subr.bf16.mxu0 0
    %832 = vmatpush1.bf16.msra.mxu0 %v780
    %833 = vmatprep.subr.bf16.mxu0 0
    %834 = vmatpush1.bf16.msra.mxu0 %v781
    %835 = vmatprep.subr.bf16.mxu0 0
    %836 = vmatpush1.bf16.msra.mxu0 %v782
    %837 = vmatprep.subr.bf16.mxu0 0
    %838 = vmatpush1.bf16.msra.mxu0 %v783
    %839 = vmatprep.subr.bf16.mxu0 0
    %840 = vmatpush1.bf16.msra.mxu0 %v784
    %841 = vmatprep.subr.bf16.mxu0 0
    %842 = vmatpush1.bf16.msra.mxu0 %v785
    %843 = vmatprep.subr.bf16.mxu0 0
    %844 = vmatpush1.bf16.msra.mxu0 %v786
    %845 = vmatprep.subr.bf16.mxu0 0
    %846 = vmatpush1.bf16.msra.mxu0 %v787
    %847 = vmatprep.subr.bf16.mxu0 0
    %848 = vmatpush1.bf16.msra.mxu0 %v788
    %849 = vmatprep.subr.bf16.mxu0 0
    %850 = vmatpush1.bf16.msra.mxu0 %v789
    %851 = vmatprep.subr.bf16.mxu0 0
    %852 = vmatpush1.bf16.msra.mxu0 %v790
    %853 = vmatprep.subr.bf16.mxu0 0
    %854 = vmatpush1.bf16.msra.mxu0 %v791
    %855 = vmatprep.subr.bf16.mxu0 0
    %856 = vmatpush1.bf16.msra.mxu0 %v792
    %857 = vmatprep.mubr.bf16.mxu0 %v631
    %858 = vmatmul.mubr.bf16.gmra.mrb[0].mxu0 %v630
    %v859 = vpop.f32.mrb[0].mxu0
    %v860 = vadd.f32 0.0, %v859
    %v861 = vpop.f32.mrb[0].mxu0
    %v862 = vpop.f32.mrb[0].mxu0
    %v863 = vadd.f32 0.0, %v862
    %v864 = vpop.f32.mrb[0].mxu0
    %865 = vdwg.mxu0
    %866 = vmatprep.subr.bf16.mxu0 0
    %867 = vmatpush1.bf16.msra.mxu0 %v793
    %868 = vmatprep.subr.bf16.mxu0 0
    %869 = vmatpush1.bf16.msra.mxu0 %v794
    %870 = vmatprep.subr.bf16.mxu0 0
    %871 = vmatpush1.bf16.msra.mxu0 %v795
    %872 = vmatprep.subr.bf16.mxu0 0
    %873 = vmatpush1.bf16.msra.mxu0 %v796
    %874 = vmatprep.subr.bf16.mxu0 0
    %875 = vmatpush1.bf16.msra.mxu0 %v797
    %876 = vmatprep.subr.bf16.mxu0 0
    %877 = vmatpush1.bf16.msra.mxu0 %v798
    %878 = vmatprep.subr.bf16.mxu0 0
    %879 = vmatpush1.bf16.msra.mxu0 %v799
    %880 = vmatprep.subr.bf16.mxu0 0
    %881 = vmatpush1.bf16.msra.mxu0 %v800
    %882 = vmatprep.subr.bf16.mxu0 0
    %883 = vmatpush1.bf16.msra.mxu0 0
    %884 = vmatprep.subr.bf16.mxu0 0
    %885 = vmatpush1.bf16.msra.mxu0 0
    %886 = vmatprep.subr.bf16.mxu0 0
    %887 = vmatpush1.bf16.msra.mxu0 0
    %888 = vmatprep.subr.bf16.mxu0 0
    %889 = vmatpush1.bf16.msra.mxu0 0
    %890 = vmatprep.subr.bf16.mxu0 0
    %891 = vmatpush1.bf16.msra.mxu0 0
    %892 = vmatprep.subr.bf16.mxu0 0
    %893 = vmatpush1.bf16.msra.mxu0 0
    %894 = vmatprep.subr.bf16.mxu0 0
    %895 = vmatpush1.bf16.msra.mxu0 0
    %896 = vmatprep.subr.bf16.mxu0 0
    %897 = vmatpush1.bf16.msra.mxu0 0
    %898 = vmatprep.mubr.bf16.mxu0 0
    %899 = vmatmul.mubr.bf16.gmra.mrb[0].mxu0 %v632
    %v900 = vpop.f32.mrb[0].mxu0
    %v901 = vadd.f32 %v860, %v900
    %v902 = vpop.f32.mrb[0].mxu0
    %v903 = vpop.f32.mrb[0].mxu0
    %v904 = vadd.f32 %v863, %v903
    %v905 = vpop.f32.mrb[0].mxu0
    %906 = vdwg.mxu0
    %907 = vst [vmem:[#allocation7] sm:$0xff] %v901
    %908 = vst [vmem:[#allocation7 + $0x8] sm:$0xff] %v904
    // Predicated region
    $region34: #{tpu_custom_call.1} parent=1 // pred_check
      _
    $region35: #{tpu_custom_call.1} parent=1 // pred_check_branch
      %910 = sbr.rel (0) target = $region37
    $region36: #{tpu_custom_call.1} parent=1 // pred_region
      %s912 = ssub.s32 256, 256
      %913 = vsyncadd [#allocation4], %s912
      %s914 = sshll.u32 [#allocation7], 4
      %s915 = int_to_ptr.vmem [resolvable:$true] %s914
      %920 = dma.vmem_to_hbm [thread:$0]  %s915, 256, %s6, [#allocation4], 128, 128, 8
    $region37: #{tpu_custom_call.1} parent=1 // pred_fallthru
      _
    // Predicated region
    $region38: #{tpu_custom_call.1} parent=1 // pred_check
      _
    $region39: #{tpu_custom_call.1} parent=1 // pred_check_branch
      %922 = sbr.rel (0) target = $region41
    $region40: #{tpu_custom_call.1} parent=1 // pred_region
      %923 = dma.done [#allocation4], 256
    $region41: #{tpu_custom_call.1} parent=1 // pred_fallthru
      _
    %924 = vsyncpa [#allocation3], 1
    %925 = vsyncpa [#allocation6], 1
    %926 = vsyncpa [#allocation4], 1

</llo_original>
